<compile_context>
chip_gen: v7x
topology: tpu7x:2x2x1
jax: 0.10.0
libtpu: 0.0.40
codegen_flags: <defaults>
</compile_context>

<pallas_src>
import numpy as np
import jax
import jax.numpy as jnp
from jax.experimental import pallas as pl
from jax.experimental.pallas import tpu as pltpu

_LANE = 128
_SUBLANE = 8


def _round_up(x, m):
    return ((x + m - 1) // m) * m


def _pad_axis(x, axis, new_size):
    pad = [(0, 0)] * x.ndim
    pad[axis] = (0, new_size - x.shape[axis])
    return jnp.pad(x, pad)


def _pad_gate_blocks(w, H, Hp):
    """torch gate-stacked (4H, ...) -> (4Hp, ...); each gate block zero-padded to Hp."""
    pad = [(0, Hp - H)] + [(0, 0)] * (w.ndim - 1)
    parts = [jnp.pad(w[g * H:(g + 1) * H], pad) for g in range(4)]
    return jnp.concatenate(parts, axis=0)


# ----------------------------------------------------------------------------------
# EncoderCNN head: flatten -> Linear -> BatchNorm1d (batch statistics, biased variance)
# ----------------------------------------------------------------------------------
def _make_encoder_kernel(B, Bp, Ep, eps):
    def kernel(x_ref, wt_ref, b_ref, gamma_ref, beta_ref, o_ref):
        # y = pooled @ W^T + b  (single MXU push, f32 accumulation)
        y = jnp.dot(x_ref[...], wt_ref[...],
                    preferred_element_type=jnp.float32) + b_ref[...]
        # BatchNorm1d default-mode forward: normalize with batch mean / biased batch var.
        # Padded batch rows are masked out of the statistics.
        row = jax.lax.broadcasted_iota(jnp.int32, (Bp, 1), 0)
        rmask = (row < B).astype(jnp.float32)
        mean = jnp.sum(y * rmask, axis=0, keepdims=True) * (1.0 / B)
        d = (y - mean) * rmask
        var = jnp.sum(d * d, axis=0, keepdims=True) * (1.0 / B)
        inv = jax.lax.rsqrt(var + eps)
        o_ref[...] = (y - mean) * inv * gamma_ref[...] + beta_ref[...]
    return kernel


def encoder_cnn_forward(pooled, params):
    """Pallas EncoderCNN head.  `pooled` is the backbone's pooled feature vector (B, F_in).

    TODO(synk): the pretrained torchvision backbone itself (EncoderCNN.backbone) has no
    self-contained Pallas equivalent, so it is not implemented here.
    """
    B, Fin = pooled.shape
    E = params["w"].shape[0]
    Bp = _round_up(max(B, _SUBLANE), _SUBLANE)
    Fp = _round_up(Fin, _LANE)
    Ep = _round_up(E, _LANE)
    f32 = jnp.float32

    x_p = _pad_axis(_pad_axis(pooled.astype(f32), 1, Fp), 0, Bp)            # (Bp, Fp)
    wt_p = _pad_axis(_pad_axis(params["w"].astype(f32), 1, Fp).T, 1, Ep)    # (Fp, Ep)
    b_p = _pad_axis(params["b"].astype(f32).reshape(1, E), 1, Ep)           # (1, Ep)
    g_p = _pad_axis(params["gamma"].astype(f32).reshape(1, E), 1, Ep)
    be_p = _pad_axis(params["beta"].astype(f32).reshape(1, E), 1, Ep)

    kernel = _make_encoder_kernel(B, Bp, Ep, float(params["eps"]))
    vmem_full = pl.BlockSpec(memory_space=pltpu.MemorySpace.VMEM)
    out = pl.pallas_call(
        kernel,
        out_shape=jax.ShapeDtypeStruct((Bp, Ep), jnp.float32),
        in_specs=[vmem_full] * 5,
        out_specs=vmem_full,
    )(x_p, wt_p, b_p, g_p, be_p)
    return out[:B, :E]


def encoder_reference(pooled, params):
    hp = jax.lax.Precision.HIGHEST
    y = jnp.dot(pooled, params["w"].T, precision=hp) + params["b"]
    mean = jnp.mean(y, axis=0, keepdims=True)
    var = jnp.mean((y - mean) ** 2, axis=0, keepdims=True)     # biased, as torch BN uses
    return (y - mean) / jnp.sqrt(var + params["eps"]) * params["gamma"] + params["beta"]


def init_encoder_params(key, feat_in, embed_size):
    k1, k2, k3, k4 = jax.random.split(key, 4)
    return {
        "w": 0.1 * jax.random.normal(k1, (embed_size, feat_in), jnp.float32),
        "b": 0.1 * jax.random.normal(k2, (embed_size,), jnp.float32),
        "gamma": 1.0 + 0.1 * jax.random.normal(k3, (embed_size,), jnp.float32),
        "beta": 0.1 * jax.random.normal(k4, (embed_size,), jnp.float32),
        "eps": 1e-5,
    }


# ----------------------------------------------------------------------------------
# DecoderRNN_onnx greedy decode (the kernel the performance review targets)
# ----------------------------------------------------------------------------------
def _make_decoder_kernel(L, T, tile_b, Ep, Hp, Vp, Tp, unroll):
    """Greedy-decode kernel for fixed (static) padded sizes over one batch tile."""

    def kernel(features_ref, table_ref, lin_wt_ref, lin_b_ref, *rest):
        layer_refs = rest[: 2 * L]              # per layer: w_cat (in_p+Hp, 4Hp), bias (1, 4Hp)
        out_ref = rest[2 * L]                   # (tile_b, Tp) int32
        xh_refs = rest[2 * L + 1: 3 * L + 1]    # per layer: persistent [x | h] (tile_b, in_p+Hp)
        c_ref = rest[3 * L + 1]                 # (L, tile_b, Hp)

        # states=None in torch -> zero initial h/c; first layer-0 input is `features`.
        for l in range(L):
            xh_refs[l][...] = jnp.zeros_like(xh_refs[l])
        c_ref[...] = jnp.zeros_like(c_ref)
        xh_refs[0][:, :Ep] = features_ref[...]

        lane_t = jax.lax.broadcasted_iota(jnp.int32, (tile_b, Tp), 1)

        def step(t, ids):
            x = None
            for l in range(L):                              # static unroll over layers
                in_p = Ep if l == 0 else Hp
                if l > 0:
                    xh_refs[l][:, :in_p] = x                # layer input -> left columns
                # Fused [x, h_prev] @ [W_ih; W_hh] + (b_ih + b_hh): one MXU push per layer.
                gates = jnp.dot(xh_refs[l][...], layer_refs[2 * l][...],
                                preferred_element_type=jnp.float32) + layer_refs[2 * l + 1][...]
                c_prev = c_ref[l]
                i_g = jax.nn.sigmoid(gates[:, 0:Hp])        # lane-aligned gate slices
                f_g = jax.nn.sigmoid(gates[:, Hp:2 * Hp])
                g_g = jnp.tanh(gates[:, 2 * Hp:3 * Hp])
                o_g = jax.nn.sigmoid(gates[:, 3 * Hp:4 * Hp])
                c_new = f_g * c_prev + i_g * g_g            # padded cols stay exactly 0
                h_new = o_g * jnp.tanh(c_new)
                c_ref[l] = c_new
                xh_refs[l][:, in_p:] = h_new                # h_prev for the next time step
                x = h_new

            # Linear head.  Padded vocab columns carry a -1e30 bias -> never win the argmax.
            # Default MXU precision (verified against the f32 HIGHEST reference); pin
            # lax.Precision.HIGHEST here if bit-exact parity is needed on real checkpoints.
            logits = (jnp.dot(x, lin_wt_ref[...], preferred_element_type=jnp.float32)
                      + lin_b_ref[...])

            # Single cross-lane reduce per step; the index extraction and the embedding
            # lookup of the winner ride the idle MXU through one dot with [embed | iota].
            # TODO(synk): assumes no exact f32 tie between two distinct vocab logits
            # (measure-zero for continuous weights); torch argmax breaks ties to the
            # first index, which would need a second (min) reduce.
            maxv = jnp.max(logits, axis=1, keepdims=True)           # the only XLU reduce
            onehot = (logits == maxv).astype(jnp.float32)           # (tile_b, Vp)
            combo = jnp.dot(onehot, table_ref[...],
                            preferred_element_type=jnp.float32)     # (tile_b, Ep + 128)
            xh_refs[0][:, :Ep] = combo[:, :Ep]                      # next-step embedding input
            idx = (combo[:, Ep:Ep + 1] + 0.5).astype(jnp.int32)     # (tile_b, 1), exact

            # ids stay in sublane orientation and live in registers: no transpose, no
            # masked partial store.  One dense (tile_b, Tp) store after the loop.
            return jnp.where(lane_t == t, idx, ids)

        ids0 = jnp.zeros((tile_b, Tp), jnp.int32)
        ids = jax.lax.fori_loop(0, T, step, ids0, unroll=unroll)
        out_ref[...] = ids

    return kernel


def decoder_rnn_onnx_forward(features, params, *, batch_grid=True, unroll=None):
    """Pallas implementation of DecoderRNN_onnx.forward (greedy search)."""
    embed_w = params["embed_w"]                    # (V, E)
    lin_w = params["lin_w"]                        # (V, H)
    lin_b = params["lin_b"]                        # (V,)
    lstm = params["lstm"]                          # list of per-layer dicts
    T = params["max_seq_length"]

    B, E = features.shape
    V, H = lin_w.shape
    L = len(lstm)

    Bp = _round_up(max(B, _SUBLANE), _SUBLANE)
    Ep = _round_up(E, _LANE)
    Hp = _round_up(H, _LANE)
    Vp = _round_up(V, _LANE)
    Tp = _round_up(T, _LANE)
    assert Vp < (1 << 24), "index column must be exactly representable in f32"

    f32 = jnp.float32
    features_p = _pad_axis(_pad_axis(features.astype(f32), 1, Ep), 0, Bp)    # (Bp, Ep)

    # Fused selection table: [ embedding | argmax-index column | zero pad ].  One one-hot
    # MXU dot per step yields both the predicted id and the next-step embedding.
    embed_w_p = _pad_axis(_pad_axis(embed_w.astype(f32), 1, Ep), 0, Vp)      # (Vp, Ep)
    aux = _pad_axis(jnp.arange(Vp, dtype=f32).reshape(Vp, 1), 1, _LANE)      # (Vp, 128)
    table_p = jnp.concatenate([embed_w_p, aux], axis=1)                      # (Vp, Ep+128)

    # Head weights: padded vocab columns are zero, padded bias columns are -1e30.
    lin_wt_p = _pad_axis(_pad_axis(lin_w.astype(f32), 1, Hp).T, 1, Vp)       # (Hp, Vp)
    lin_b_p = jnp.full((1, Vp), -1e30, f32).at[:, :V].set(
        lin_b.astype(f32).reshape(1, V))                                     # (1, Vp)

    inputs = [features_p, table_p, lin_wt_p, lin_b_p]
    for l, layer in enumerate(lstm):
        in_p = Ep if l == 0 else Hp
        w_ih = _pad_axis(_pad_gate_blocks(layer["w_ih"].astype(f32), H, Hp), 1, in_p)
        w_hh = _pad_axis(_pad_gate_blocks(layer["w_hh"].astype(f32), H, Hp), 1, Hp)
        bias = _pad_gate_blocks((layer["b_ih"] + layer["b_hh"]).astype(f32), H, Hp)
        w_cat = jnp.concatenate([w_ih.T, w_hh.T], axis=0)                    # (in_p+Hp, 4Hp)
        inputs += [w_cat, bias.reshape(1, 4 * Hp)]

    tile_b = _SUBLANE if batch_grid else Bp
    n_tiles = Bp // tile_b

    if unroll is None:
        unroll_val = True if T * L <= 64 else 2    # cap unroll for long decodes (vreg pressure)
    elif unroll is False:
        unroll_val = 1
    else:
        unroll_val = unroll

    kernel = _make_decoder_kernel(L, T, tile_b, Ep, Hp, Vp, Tp, unroll_val)

    scratch_shapes = [pltpu.VMEM((tile_b, (Ep if l == 0 else Hp) + Hp), jnp.float32)
                      for l in range(L)]
    scratch_shapes.append(pltpu.VMEM((L, tile_b, Hp), jnp.float32))

    # VMEM budget: real footprint + 50% headroom, hard-capped well below v7x's 64 MiB.
    resident = sum(int(np.prod(a.shape)) * a.dtype.itemsize for a in inputs)
    scratch_bytes = 4 * sum(tile_b * ((Ep if l == 0 else Hp) + Hp) for l in range(L))
    scratch_bytes += 4 * L * tile_b * Hp
    footprint = resident + scratch_bytes + Bp * Tp * 4
    vmem_limit = int(min(48 * 2 ** 20, max(4 * 2 ** 20, int(footprint * 1.5))))

    # TODO(synk): for realistic vocabularies on v7x (64 MiB VMEM) keep lin_wt_p / table_p in
    # HBM (memory_space=pl.ANY) and stream 512-1024-lane V tiles with double-buffered
    # make_async_copy plus a running (max, one-hot-dot) update; the fully VMEM-resident path
    # below is kept for v5e/v6e (128 MiB) and small vocabularies.
    vmem_full = pl.BlockSpec(memory_space=pltpu.MemorySpace.VMEM)
    out_shape = jax.ShapeDtypeStruct((Bp, Tp), jnp.int32)

    if batch_grid:
        # Batch-tile grid axis: independent greedy decodes per tile; "parallel" lets the two
        # v7x TensorCores split the batch (grid collapses to (1,) at the demo size).
        call = pl.pallas_call(
            kernel,
            out_shape=out_shape,
            grid=(n_tiles,),
            in_specs=[pl.BlockSpec((tile_b, Ep), lambda i: (i, 0))]
                     + [vmem_full] * (len(inputs) - 1),
            out_specs=pl.BlockSpec((tile_b, Tp), lambda i: (i, 0)),
            scratch_shapes=scratch_shapes,
            compiler_params=pltpu.CompilerParams(
                dimension_semantics=("parallel",), vmem_limit_bytes=vmem_limit),
        )
    else:
        call = pl.pallas_call(
            kernel,
            out_shape=out_shape,
            in_specs=[vmem_full] * len(inputs),
            out_specs=vmem_full,
            scratch_shapes=scratch_shapes,
            compiler_params=pltpu.CompilerParams(vmem_limit_bytes=vmem_limit),
        )

    out_bt = call(*inputs)
    # torch: sampled_ids = cat([pred_t.unsqueeze(0) for t], dim=1) -> (1, T*B), step-major.
    return out_bt[:B, :T].T.reshape(1, T * B)


def run_decoder(features, params):
    """Prefer the batch-gridded, fully-unrolled configuration; fall back to the proven
    grid-less structure if the current Mosaic build rejects it, so the script always runs."""
    last_err = None
    for batch_grid, unroll in ((True, None), (False, None), (False, False)):
        try:
            out = decoder_rnn_onnx_forward(features, params,
                                           batch_grid=batch_grid, unroll=unroll)
            return jax.block_until_ready(out)
        except Exception as err:            # lowering/compile failure -> next config
            last_err = err
    raise last_err


def init_params(key, embed_size, hidden_size, vocab_size, num_layers, max_seq_length):
    """Deterministic synthetic parameters with the same shapes as the torch decoder."""
    ks = iter(jax.random.split(key, 3 + 4 * num_layers))
    params = {
        "embed_w": 0.1 * jax.random.normal(next(ks), (vocab_size, embed_size), jnp.float32),
        "lin_w": 0.1 * jax.random.normal(next(ks), (vocab_size, hidden_size), jnp.float32),
        "lin_b": 0.1 * jax.random.normal(next(ks), (vocab_size,), jnp.float32),
        "lstm": [],
        "max_seq_length": max_seq_length,
    }
    for l in range(num_layers):
        in_size = embed_size if l == 0 else hidden_size
        params["lstm"].append({
            "w_ih": 0.1 * jax.random.normal(next(ks), (4 * hidden_size, in_size), jnp.float32),
            "w_hh": 0.1 * jax.random.normal(next(ks), (4 * hidden_size, hidden_size), jnp.float32),
            "b_ih": 0.1 * jax.random.normal(next(ks), (4 * hidden_size,), jnp.float32),
            "b_hh": 0.1 * jax.random.normal(next(ks), (4 * hidden_size,), jnp.float32),
        })
    return params


def reference_forward(features, params):
    """Pure-JAX reference mirroring torch greedy-decode semantics (correctness check)."""
    T = params["max_seq_length"]
    lstm = params["lstm"]
    L = len(lstm)
    B = features.shape[0]
    H = lstm[0]["w_hh"].shape[1]
    hp = jax.lax.Precision.HIGHEST

    h = jnp.zeros((L, B, H), jnp.float32)
    c = jnp.zeros((L, B, H), jnp.float32)
    x = features
    ids = []
    for _ in range(T):
        for l in range(L):
            lyr = lstm[l]
            gates = (jnp.dot(x, lyr["w_ih"].T, precision=hp) + lyr["b_ih"]
                     + jnp.dot(h[l], lyr["w_hh"].T, precision=hp) + lyr["b_hh"])
            i_g = jax.nn.sigmoid(gates[:, :H])
            f_g = jax.nn.sigmoid(gates[:, H:2 * H])
            g_g = jnp.tanh(gates[:, 2 * H:3 * H])
            o_g = jax.nn.sigmoid(gates[:, 3 * H:4 * H])
            c_new = f_g * c[l] + i_g * g_g
            h_new = o_g * jnp.tanh(c_new)
            h = h.at[l].set(h_new)
            c = c.at[l].set(c_new)
            x = h_new
        logits = jnp.dot(x, params["lin_w"].T, precision=hp) + params["lin_b"]
        pred = jnp.argmax(logits, axis=1).astype(jnp.int32)
        ids.append(pred)
        x = params["embed_w"][pred]
    return jnp.stack(ids, axis=0).reshape(1, -1)


if __name__ == "__main__":
    # Small shapes consistent with the captioning model's forward pass.
    feat_in = 64            # backbone pooled-feature width (stand-in for backbone.fc.in_features)
    embed_size = 16
    hidden_size = 32
    vocab_size = 100        # deliberately not a lane multiple: exercises the -1e30 vocab padding
    num_layers = 2
    max_seq_length = 8
    batch = 4

    key = jax.random.PRNGKey(0)
    k_enc, k_img, k_dec = jax.random.split(key, 3)

    # ---- EncoderCNN head ----------------------------------------------------------
    # TODO(synk): the pretrained torchvision backbone (EncoderCNN.backbone) cannot be built
    # in a self-contained script; the kernel consumes the backbone's pooled feature vector.
    pooled = jax.random.normal(k_img, (batch, feat_in), jnp.float32)
    enc_params = init_encoder_params(k_enc, feat_in, embed_size)
    features = jax.block_until_ready(encoder_cnn_forward(pooled, enc_params))
    features_ref = jax.block_until_ready(encoder_reference(pooled, enc_params))
    assert features.shape == (batch, embed_size), features.shape
    np.testing.assert_allclose(np.asarray(features), np.asarray(features_ref),
                               rtol=5e-3, atol=5e-3)

    # ---- DecoderRNN_onnx greedy decode (consumes the encoder's features) ----------
    dec_params = init_params(k_dec, embed_size, hidden_size, vocab_size,
                             num_layers, max_seq_length)
    sampled_ids = run_decoder(features, dec_params)

    assert sampled_ids.shape == (1, max_seq_length * batch), sampled_ids.shape
    assert sampled_ids.dtype == jnp.int32
    assert bool(jnp.all((sampled_ids >= 0) & (sampled_ids < vocab_size)))

    ref_ids = jax.block_until_ready(reference_forward(features, dec_params))
    assert np.array_equal(np.asarray(sampled_ids), np.asarray(ref_ids)), (
        "kernel ids do not match reference")

    print("KERNEL_OK")
</pallas_src>

<mosaic_0001>
module attributes {stable_mosaic.version = 11 : i64} {
  func.func @kernel(%arg0: memref<8x128xf32, #tpu.memory_space<vmem>>, %arg1: memref<128x128xf32, #tpu.memory_space<vmem>>, %arg2: memref<1x128xf32, #tpu.memory_space<vmem>>, %arg3: memref<1x128xf32, #tpu.memory_space<vmem>>, %arg4: memref<1x128xf32, #tpu.memory_space<vmem>>, %arg5: memref<8x128xf32, #tpu.memory_space<vmem>>) attributes {dimension_semantics = [], scalar_prefetch = 0 : i64, scratch_operands = 0 : i64, tpu.core_type = #tpu.core_type<tc>} {
    %c0 = arith.constant 0 : index
    %c0_0 = arith.constant 0 : index
    %0 = vector.load %arg0[%c0, %c0_0] : memref<8x128xf32, #tpu.memory_space<vmem>>, vector<8x128xf32>
    %c0_1 = arith.constant 0 : index
    %c0_2 = arith.constant 0 : index
    %1 = vector.load %arg1[%c0_1, %c0_2] : memref<128x128xf32, #tpu.memory_space<vmem>>, vector<128x128xf32>
    %cst = arith.constant dense<0.000000e+00> : vector<8x128xf32>
    %2 = tpu.matmul %0, %1, %cst {dimension_numbers = #tpu.dot_dimension_numbers<[1], [0], [0], [1], [0, 0, 1, 1], [], []>} : vector<8x128xf32>, vector<128x128xf32>, vector<8x128xf32> -> vector<8x128xf32>
    %c0_3 = arith.constant 0 : index
    %c0_4 = arith.constant 0 : index
    %3 = vector.load %arg2[%c0_3, %c0_4] : memref<1x128xf32, #tpu.memory_space<vmem>>, vector<1x128xf32>
    %4 = vector.broadcast %3 : vector<1x128xf32> to vector<8x128xf32>
    %5 = arith.addf %2, %4 : vector<8x128xf32>
    %6 = tpu.iota {dimensions = array<i32: 0>} : vector<8x1xi32>
    %c4_i32 = arith.constant 4 : i32
    %7 = vector.broadcast %c4_i32 : i32 to vector<8x1xi32>
    %8 = arith.cmpi slt, %6, %7 : vector<8x1xi32>
    %9 = arith.extui %8 : vector<8x1xi1> to vector<8x1xi32>
    %10 = arith.sitofp %9 : vector<8x1xi32> to vector<8x1xf32>
    %11 = vector.broadcast %10 : vector<8x1xf32> to vector<8x128xf32>
    %12 = arith.mulf %5, %11 : vector<8x128xf32>
    %cst_5 = arith.constant dense<0.000000e+00> : vector<128xf32>
    %13 = vector.multi_reduction <add>, %12, %cst_5 [0] : vector<8x128xf32> to vector<128xf32>
    %14 = vector.shape_cast %13 : vector<128xf32> to vector<1x128xf32>
    %cst_6 = arith.constant 2.500000e-01 : f32
    %15 = vector.broadcast %cst_6 : f32 to vector<1x128xf32>
    %16 = arith.mulf %14, %15 : vector<1x128xf32>
    %17 = vector.broadcast %16 : vector<1x128xf32> to vector<8x128xf32>
    %18 = arith.subf %5, %17 : vector<8x128xf32>
    %19 = vector.broadcast %10 : vector<8x1xf32> to vector<8x128xf32>
    %20 = arith.mulf %18, %19 : vector<8x128xf32>
    %21 = arith.mulf %20, %20 : vector<8x128xf32>
    %cst_7 = arith.constant dense<0.000000e+00> : vector<128xf32>
    %22 = vector.multi_reduction <add>, %21, %cst_7 [0] : vector<8x128xf32> to vector<128xf32>
    %23 = vector.shape_cast %22 : vector<128xf32> to vector<1x128xf32>
    %cst_8 = arith.constant 2.500000e-01 : f32
    %24 = vector.broadcast %cst_8 : f32 to vector<1x128xf32>
    %25 = arith.mulf %23, %24 : vector<1x128xf32>
    %cst_9 = arith.constant 9.99999974E-6 : f32
    %26 = vector.broadcast %cst_9 : f32 to vector<1x128xf32>
    %27 = arith.addf %25, %26 : vector<1x128xf32>
    %28 = math.rsqrt %27 : vector<1x128xf32>
    %29 = vector.broadcast %16 : vector<1x128xf32> to vector<8x128xf32>
    %30 = arith.subf %5, %29 : vector<8x128xf32>
    %31 = vector.broadcast %28 : vector<1x128xf32> to vector<8x128xf32>
    %32 = arith.mulf %30, %31 : vector<8x128xf32>
    %c0_10 = arith.constant 0 : index
    %c0_11 = arith.constant 0 : index
    %33 = vector.load %arg3[%c0_10, %c0_11] : memref<1x128xf32, #tpu.memory_space<vmem>>, vector<1x128xf32>
    %34 = vector.broadcast %33 : vector<1x128xf32> to vector<8x128xf32>
    %35 = arith.mulf %32, %34 : vector<8x128xf32>
    %c0_12 = arith.constant 0 : index
    %c0_13 = arith.constant 0 : index
    %36 = vector.load %arg4[%c0_12, %c0_13] : memref<1x128xf32, #tpu.memory_space<vmem>>, vector<1x128xf32>
    %37 = vector.broadcast %36 : vector<1x128xf32> to vector<8x128xf32>
    %38 = arith.addf %35, %37 : vector<8x128xf32>
    %c0_14 = arith.constant 0 : index
    %c0_15 = arith.constant 0 : index
    %39 = vector.load %arg5[%c0_14, %c0_15] : memref<8x128xf32, #tpu.memory_space<vmem>>, vector<8x128xf32>
    tpu.vector_store %arg5[%c0_14, %c0_15], %38 {strides = array<i32>} : memref<8x128xf32, #tpu.memory_space<vmem>>, vector<8x128xf32>,
    return
  }
}

</mosaic_0001>

<llo_original>
// kernel: tpu_custom_call.1
$region0: #{tpu_custom_call.1}
  #allocation0 [shape = 'u32[]', space=smem, size = 0x4, offset = 0x4, fixed_abs, tag = 'smem constant byte address 0x4 - core index']
  #allocation1 [shape = 'u32[144,128]{1,0:T(1,128)}', space=vmem, size = 0x12000, scoped, tag = 'internal scratch']
  %s0 = inlined_call_operand.hbm [shape: f32[8,128], index: 0, kind: input, shape index: {}]
  %s1 = inlined_call_operand.hbm [shape: f32[128,128], index: 1, kind: input, shape index: {}]
  %s2 = inlined_call_operand.vmem [shape: f32[1,128], index: 2, kind: input, shape index: {}]
  %s3 = inlined_call_operand.vmem [shape: f32[1,128], index: 3, kind: input, shape index: {}]
  %s4 = inlined_call_operand.vmem [shape: f32[1,128], index: 4, kind: input, shape index: {}]
  %s5 = inlined_call_operand.hbm [shape: f32[8,128], index: 5, kind: output, shape index: {}]
  %s6 = sld [smem:[#allocation0]]
  $region38: #{tpu_custom_call.1} parent=0
    _
  %s8 = ssub.s32 1, %s6
  %s9 = scalar_select 0, %s8, %s6
  $region1: #{tpu_custom_call.1} parent=0
    #allocation2 [shape = 'u8[4096]{0}', space=vmem, size = 0x1000, scoped, tag = 'input window, operand 0, single buffered']
    #allocation3 [shape = 's32[1]{0}', space=sflag, size = 0x4, scoped, tag = 'scoped memory for tpu_custom_call.1']
    #allocation4 [shape = 's32[1]{0}', space=sflag, size = 0x4, scoped, tag = 'scoped memory for tpu_custom_call.1']
    #allocation5 [shape = 'u8[65536]{0}', space=vmem, size = 0x10000, scoped, tag = 'input window, operand 1, single buffered']
    #allocation6 [shape = 's32[1]{0}', space=sflag, size = 0x4, scoped, tag = 'scoped memory for tpu_custom_call.1']
    #allocation7 [shape = 'u8[4096]{0}', space=vmem, size = 0x1000, scoped, tag = 'output window, operand 0, single buffered']
    %10 = vsyncpa [#allocation3], 0
    %11 = vsyncpa [#allocation6], 0
    %12 = vsyncpa [#allocation4], 0
    // Predicated region
    $region2: #{tpu_custom_call.1} parent=1 // pred_check
      _
    $region3: #{tpu_custom_call.1} parent=1 // pred_check_branch
      %14 = sbr.rel (0) target = $region5
    $region4: #{tpu_custom_call.1} parent=1 // pred_region
      %s16 = ssub.s32 128, 128
      %17 = vsyncadd [#allocation3], %s16
      %s19 = sshll.u32 [#allocation2], 4
      %s20 = int_to_ptr.vmem [resolvable:$true] %s19
      %22 = dma.hbm_to_vmem [thread:$0]  %s0, 128, %s20, [#allocation3]
    $region5: #{tpu_custom_call.1} parent=1 // pred_fallthru
      _
    // Predicated region
    $region6: #{tpu_custom_call.1} parent=1 // pred_check
      _
    $region7: #{tpu_custom_call.1} parent=1 // pred_check_branch
      %24 = sbr.rel (0) target = $region9
    $region8: #{tpu_custom_call.1} parent=1 // pred_region
      %s26 = ssub.s32 2048, 2048
      %27 = vsyncadd [#allocation6], %s26
      %s28 = sshll.u32 [#allocation5], 4
      %s29 = int_to_ptr.vmem [resolvable:$true] %s28
      %34 = dma.hbm_to_vmem [thread:$0]  %s1, 2048, %s29, [#allocation6], 128, 128, 8
    $region9: #{tpu_custom_call.1} parent=1 // pred_fallthru
      _
    // Predicated region
    $region10: #{tpu_custom_call.1} parent=1 // pred_check
      _
    $region11: #{tpu_custom_call.1} parent=1 // pred_check_branch
      %36 = sbr.rel (0) target = $region13
    $region12: #{tpu_custom_call.1} parent=1 // pred_region
      _
    $region13: #{tpu_custom_call.1} parent=1 // pred_fallthru
      _
    // Predicated region
    $region14: #{tpu_custom_call.1} parent=1 // pred_check
      _
    $region15: #{tpu_custom_call.1} parent=1 // pred_check_branch
      %38 = sbr.rel (0) target = $region17
    $region16: #{tpu_custom_call.1} parent=1 // pred_region
      _
    $region17: #{tpu_custom_call.1} parent=1 // pred_fallthru
      _
    // Predicated region
    $region18: #{tpu_custom_call.1} parent=1 // pred_check
      _
    $region19: #{tpu_custom_call.1} parent=1 // pred_check_branch
      %40 = sbr.rel (0) target = $region21
    $region20: #{tpu_custom_call.1} parent=1 // pred_region
      _
    $region21: #{tpu_custom_call.1} parent=1 // pred_fallthru
      _
    // Predicated region
    $region22: #{tpu_custom_call.1} parent=1 // pred_check
      _
    $region23: #{tpu_custom_call.1} parent=1 // pred_check_branch
      %42 = sbr.rel (0) target = $region25
    $region24: #{tpu_custom_call.1} parent=1 // pred_region
      %43 = dma.done [#allocation3], 128
    $region25: #{tpu_custom_call.1} parent=1 // pred_fallthru
      _
    // Predicated region
    $region26: #{tpu_custom_call.1} parent=1 // pred_check
      _
    $region27: #{tpu_custom_call.1} parent=1 // pred_check_branch
      %45 = sbr.rel (0) target = $region29
    $region28: #{tpu_custom_call.1} parent=1 // pred_region
      %46 = dma.done [#allocation6], 2048
    $region29: #{tpu_custom_call.1} parent=1 // pred_fallthru
      _
    %v47 = vld [vmem:[#allocation2] sm:$0xff]
    %v48 = vld [vmem:[#allocation5] sm:$0xff]
    %v49 = vld [vmem:[#allocation5 + $0x8] sm:$0xff]
    %v50 = vld [vmem:[#allocation5 + $0x10] sm:$0xff]
    %v51 = vld [vmem:[#allocation5 + $0x18] sm:$0xff]
    %v52 = vld [vmem:[#allocation5 + $0x20] sm:$0xff]
    %v53 = vld [vmem:[#allocation5 + $0x28] sm:$0xff]
    %v54 = vld [vmem:[#allocation5 + $0x30] sm:$0xff]
    %v55 = vld [vmem:[#allocation5 + $0x38] sm:$0xff]
    %v56 = vld [vmem:[#allocation5 + $0x40] sm:$0xff]
    %v57 = vld [vmem:[#allocation5 + $0x48] sm:$0xff]
    %v58 = vld [vmem:[#allocation5 + $0x50] sm:$0xff]
    %v59 = vld [vmem:[#allocation5 + $0x58] sm:$0xff]
    %v60 = vld [vmem:[#allocation5 + $0x60] sm:$0xff]
    %v61 = vld [vmem:[#allocation5 + $0x68] sm:$0xff]
    %v62 = vld [vmem:[#allocation5 + $0x70] sm:$0xff]
    %v63 = vld [vmem:[#allocation5 + $0x78] sm:$0xff]
    %v64 = vld [vmem:[%s2] sm:$0x1]
    %v66 = vlaneseq
    %v67 = vshrl.u32 %v66, 7
    %v68 = vsub.s32 0, %v67
    %v69 = vrot.slane %v64, %v68
    %71 = vmatprep.subr.mxu0 0.0
    %72 = vmatpush1.msra.mxu0 %v48
    %73 = vmatprep.subr.mxu0 0.0
    %74 = vmatpush1.msra.mxu0 %v49
    %75 = vmatprep.subr.mxu0 0.0
    %76 = vmatpush1.msra.mxu0 %v50
    %77 = vmatprep.subr.mxu0 0.0
    %78 = vmatpush1.msra.mxu0 %v51
    %79 = vmatprep.subr.mxu0 0.0
    %80 = vmatpush1.msra.mxu0 %v52
    %81 = vmatprep.subr.mxu0 0.0
    %82 = vmatpush1.msra.mxu0 %v53
    %83 = vmatprep.subr.mxu0 0.0
    %84 = vmatpush1.msra.mxu0 %v54
    %85 = vmatprep.subr.mxu0 0.0
    %86 = vmatpush1.msra.mxu0 %v55
    %87 = vmatprep.subr.mxu0 0.0
    %88 = vmatpush1.msra.mxu0 %v56
    %89 = vmatprep.subr.mxu0 0.0
    %90 = vmatpush1.msra.mxu0 %v57
    %91 = vmatprep.subr.mxu0 0.0
    %92 = vmatpush1.msra.mxu0 %v58
    %93 = vmatprep.subr.mxu0 0.0
    %94 = vmatpush1.msra.mxu0 %v59
    %95 = vmatprep.subr.mxu0 0.0
    %96 = vmatpush1.msra.mxu0 %v60
    %97 = vmatprep.subr.mxu0 0.0
    %98 = vmatpush1.msra.mxu0 %v61
    %99 = vmatprep.subr.mxu0 0.0
    %100 = vmatpush1.msra.mxu0 %v62
    %101 = vmatprep.subr.mxu0 0.0
    %102 = vmatpush1.msra.mxu0 %v63
    %103 = vmatprep.subr.mxu0 0.0
    %104 = vmatpush1.msra.mxu0 0.0
    %105 = vmatprep.subr.mxu0 0.0
    %106 = vmatpush1.msra.mxu0 0.0
    %107 = vmatprep.subr.mxu0 0.0
    %108 = vmatpush1.msra.mxu0 0.0
    %109 = vmatprep.subr.mxu0 0.0
    %110 = vmatpush1.msra.mxu0 0.0
    %111 = vmatprep.subr.mxu0 0.0
    %112 = vmatpush1.msra.mxu0 0.0
    %113 = vmatprep.subr.mxu0 0.0
    %114 = vmatpush1.msra.mxu0 0.0
    %115 = vmatprep.subr.mxu0 0.0
    %116 = vmatpush1.msra.mxu0 0.0
    %117 = vmatprep.subr.mxu0 0.0
    %118 = vmatpush1.msra.mxu0 0.0
    %119 = vmatprep.subr.mxu0 0.0
    %120 = vmatpush1.msra.mxu0 0.0
    %121 = vmatprep.subr.mxu0 0.0
    %122 = vmatpush1.msra.mxu0 0.0
    %123 = vmatprep.subr.mxu0 0.0
    %124 = vmatpush1.msra.mxu0 0.0
    %125 = vmatprep.subr.mxu0 0.0
    %126 = vmatpush1.msra.mxu0 0.0
    %127 = vmatprep.subr.mxu0 0.0
    %128 = vmatpush1.msra.mxu0 0.0
    %129 = vmatprep.subr.mxu0 0.0
    %130 = vmatpush1.msra.mxu0 0.0
    %131 = vmatprep.subr.mxu0 0.0
    %132 = vmatpush1.msra.mxu0 0.0
    %133 = vmatprep.subr.mxu0 0.0
    %134 = vmatpush1.msra.mxu0 0.0
    %135 = vmatprep.mubr.f32.mxu0 0.0
    %136 = vmatmul.mubr.f32.gmra.mrb[0].mxu0 %v47
    %v137 = vpop.f32.mrb[0].mxu0
    %v138 = vadd.f32 %v69, %v137
    %v139 = vpop.f32.mrb[0].mxu0
    %140 = vdwg.mxu0
    %v141 = vlaneseq
    %v142 = vshrl.u32 %v141, 7
    %vm143 = vcmp.lt.s32.totalorder %v142, 4
    %v144 = vsel %vm143, 1, 0
    %v145 = vcvt.s32.f32 %v144
    %v146 = vmul.f32 %v138, %v145
    %v147 = vrot.slane %v146, 4
    %v148 = vadd.f32 %v146, %v147
    %v149 = vrot.slane %v148, 2
    %v150 = vadd.f32 %v148, %v149
    %v151 = vrot.slane %v150, 1
    %v152 = vadd.f32 %v150, %v151
    %v153 = vmul.f32 %v152, 0.25
    %v154 = vsub.f32 %v138, %v153
    %v155 = vmul.f32 %v154, %v145
    %v156 = vmul.f32 %v155, %v155
    %v157 = vrot.slane %v156, 4
    %v158 = vadd.f32 %v156, %v157
    %v159 = vrot.slane %v158, 2
    %v160 = vadd.f32 %v158, %v159
    %v161 = vrot.slane %v160, 1
    %v162 = vadd.f32 %v160, %v161
    %v163 = vmul.f32 %v162, 0.25
    %v164 = vadd.f32 %v163, 1e-05
    %v165 = vrsqrt.pop %v164
    %v166 = vmul.f32 %v154, %v165
    %v167 = vld [vmem:[%s3] sm:$0x1]
    %v169 = vlaneseq
    %v170 = vshrl.u32 %v169, 7
    %v171 = vsub.s32 0, %v170
    %v172 = vrot.slane %v167, %v171
    %v174 = vmul.f32 %v166, %v172
    %v175 = vld [vmem:[%s4] sm:$0x1]
    %v177 = vlaneseq
    %v178 = vshrl.u32 %v177, 7
    %v179 = vsub.s32 0, %v178
    %v180 = vrot.slane %v175, %v179
    %v182 = vadd.f32 %v174, %v180
    %183 = vst [vmem:[#allocation7] sm:$0xff] %v182
    // Predicated region
    $region30: #{tpu_custom_call.1} parent=1 // pred_check
      _
    $region31: #{tpu_custom_call.1} parent=1 // pred_check_branch
      %185 = sbr.rel (0) target = $region33
    $region32: #{tpu_custom_call.1} parent=1 // pred_region
      %s187 = ssub.s32 128, 128
      %188 = vsyncadd [#allocation4], %s187
      %s190 = sshll.u32 [#allocation7], 4
      %s191 = int_to_ptr.vmem [resolvable:$true] %s190
      %193 = dma.vmem_to_hbm [thread:$0]  %s191, 128, %s5, [#allocation4]
    $region33: #{tpu_custom_call.1} parent=1 // pred_fallthru
      _
    // Predicated region
    $region34: #{tpu_custom_call.1} parent=1 // pred_check
      _
    $region35: #{tpu_custom_call.1} parent=1 // pred_check_branch
      %195 = sbr.rel (0) target = $region37
    $region36: #{tpu_custom_call.1} parent=1 // pred_region
      %196 = dma.done [#allocation4], 128
    $region37: #{tpu_custom_call.1} parent=1 // pred_fallthru
      _
    %197 = vsyncpa [#allocation3], 1
    %198 = vsyncpa [#allocation6], 1
    %199 = vsyncpa [#allocation4], 1

</llo_original>
